<compile_context>
chip_gen: v7x
topology: tpu7x:2x2x1
jax: 0.10.0
libtpu: 0.0.40
codegen_flags: <defaults>
</compile_context>

<pallas_src>
import jax
import jax.numpy as jnp
from jax.experimental import pallas as pl
from jax.experimental.pallas import tpu as pltpu


def build_sinusoidal_table(n: int, n_embd: int, theta: float = 10000.0) -> jnp.ndarray:
    """Deterministic parameter init, matching SinusoidalPosEmb.__init__ exactly."""
    assert n_embd % 2 == 0, "use even n_embd (as in the DDPM model)"
    j = jnp.arange(n_embd, dtype=jnp.float32)
    wei = 1.0 / jnp.power(theta, 2.0 * j / n_embd)            # (n_embd,)
    t = jnp.arange(n, dtype=jnp.float32).reshape(n, 1)         # (n, 1)
    wei_even = wei[::2]                                        # wei[2j] — used for BOTH sin & cos
    table = jnp.zeros((n, n_embd), dtype=jnp.float32)
    table = table.at[:, 0::2].set(jnp.sin(t * wei_even[None, :]))
    table = table.at[:, 1::2].set(jnp.cos(t * wei_even[None, :]))
    return table


def _emb_lookup_kernel(idx_ref, table_ref, out_ref):
    # idx_ref:   (TB, 1)      int32 indices for this batch tile (VMEM)
    # table_ref: (n, n_embd)  full embedding table, resident in VMEM across the grid
    # out_ref:   (TB, n_embd) output tile
    tb = out_ref.shape[0]
    n = table_ref.shape[0]
    idx = idx_ref[...]                                           # (TB, 1) int32
    row_ids = jax.lax.broadcasted_iota(jnp.int32, (tb, n), 1)    # (TB, n)
    onehot = (row_ids == idx).astype(jnp.float32)                # (TB, n) one-hot
    # Gather as a single MXU pass: onehot @ table.
    out_ref[...] = jnp.dot(
        onehot, table_ref[...], preferred_element_type=jnp.float32
    ).astype(out_ref.dtype)


def sinusoidal_pos_emb(x: jnp.ndarray, table: jnp.ndarray, *, batch_tile: int = 128) -> jnp.ndarray:
    """Pallas embedding lookup: returns table[x], shape x.shape + (n_embd,)."""
    orig_shape = x.shape
    x_flat = x.reshape(-1)
    B = x_flat.shape[0]
    n, n_embd = table.shape

    # Clamp indices into [0, n): avoids silently-wrong gathers for OOB inputs.
    idx = jnp.clip(x_flat.astype(jnp.int32), 0, n - 1)

    # Pick a sublane-dense batch tile (multiple of 8), cap at batch_tile.
    tb = min(batch_tile, ((B + 7) // 8) * 8)
    tb = max(8, ((tb + 7) // 8) * 8)
    b_pad = ((B + tb - 1) // tb) * tb
    idx = jnp.pad(idx, (0, b_pad - B)).reshape(b_pad, 1)

    grid = (b_pad // tb,)

    cost = pl.CostEstimate(
        flops=2 * b_pad * n * n_embd,
        transcendentals=0,
        bytes_accessed=b_pad * n_embd * 4 + n * n_embd * 4 + b_pad * 4,
    )

    out = pl.pallas_call(
        _emb_lookup_kernel,
        out_shape=jax.ShapeDtypeStruct((b_pad, n_embd), table.dtype),
        grid_spec=pltpu.PrefetchScalarGridSpec(
            num_scalar_prefetch=0,
            grid=grid,
            in_specs=[
                # Per-tile indices (TB, 1): last dim equals full extent, sublanes 8-divisible.
                pl.BlockSpec((tb, 1), lambda i: (i, 0)),
                # Whole table, VMEM-resident across the grid (same block every step -> one DMA).
                pl.BlockSpec((n, n_embd), lambda i: (0, 0)),
            ],
            out_specs=pl.BlockSpec((tb, n_embd), lambda i: (i, 0)),
        ),
        compiler_params=pltpu.CompilerParams(
            # Batch rows are independent (no accumulator): shard across TCs on v7x.
            dimension_semantics=("parallel",),
        ),
        cost_estimate=cost,
    )(idx, table)

    return out[:B].reshape(*orig_shape, n_embd)


if __name__ == "__main__":
    # Small, forward-consistent shapes: n=64 positions, n_embd=128, batch=8 indices.
    n, n_embd, B = 64, 128, 8
    theta = 10000.0

    table = build_sinusoidal_table(n, n_embd, theta)

    key = jax.random.PRNGKey(0)
    x = jax.random.randint(key, (B,), 0, n, dtype=jnp.int32)

    out = sinusoidal_pos_emb(x, table)
    out = jax.block_until_ready(out)

    # Correctness check against the pure-JAX reference (embedding lookup).
    ref = table[x]
    assert out.shape == (B, n_embd)
    assert out.dtype == jnp.float32
    assert jnp.allclose(out, ref, atol=1e-6, rtol=1e-6)

    print("KERNEL_OK")
</pallas_src>

<mosaic_0001>
module attributes {stable_mosaic.version = 11 : i64} {
  func.func @_emb_lookup_kernel(%arg0: i32, %arg1: memref<8x1xi32, #tpu.memory_space<vmem>>, %arg2: memref<64x128xf32, #tpu.memory_space<vmem>>, %arg3: memref<8x128xf32, #tpu.memory_space<vmem>>) attributes {dimension_semantics = [#tpu.dimension_semantics<parallel>], iteration_bounds = array<i64: 1>, scalar_prefetch = 0 : i64, scratch_operands = 0 : i64, tpu.core_type = #tpu.core_type<tc>, window_params = [{transform_indices = @transform_0, window_bounds = array<i64: 8, 1>}, {pipeline_mode = #tpu.pipeline_mode<synchronous>, transform_indices = @transform_1, window_bounds = array<i64: 64, 128>}, {transform_indices = @transform_2, window_bounds = array<i64: 8, 128>}]} {
    %c0 = arith.constant 0 : index
    %c0_0 = arith.constant 0 : index
    %0 = vector.load %arg1[%c0, %c0_0] : memref<8x1xi32, #tpu.memory_space<vmem>>, vector<8x1xi32>
    %1 = tpu.iota {dimensions = array<i32: 1>} : vector<8x64xi32>
    %2 = vector.broadcast %0 : vector<8x1xi32> to vector<8x64xi32>
    %3 = arith.cmpi eq, %1, %2 : vector<8x64xi32>
    %4 = arith.extui %3 : vector<8x64xi1> to vector<8x64xi32>
    %5 = arith.sitofp %4 : vector<8x64xi32> to vector<8x64xf32>
    %c0_1 = arith.constant 0 : index
    %c0_2 = arith.constant 0 : index
    %6 = vector.load %arg2[%c0_1, %c0_2] : memref<64x128xf32, #tpu.memory_space<vmem>>, vector<64x128xf32>
    %cst = arith.constant dense<0.000000e+00> : vector<8x128xf32>
    %7 = tpu.matmul %5, %6, %cst {dimension_numbers = #tpu.dot_dimension_numbers<[1], [0], [0], [1], [0, 0, 1, 1], [], []>} : vector<8x64xf32>, vector<64x128xf32>, vector<8x128xf32> -> vector<8x128xf32>
    %c0_3 = arith.constant 0 : index
    %c0_4 = arith.constant 0 : index
    %8 = vector.load %arg3[%c0_3, %c0_4] : memref<8x128xf32, #tpu.memory_space<vmem>>, vector<8x128xf32>
    tpu.vector_store %arg3[%c0_3, %c0_4], %7 {strides = array<i32>} : memref<8x128xf32, #tpu.memory_space<vmem>>, vector<8x128xf32>,
    return
  }
  func.func @transform_0(%arg0: i32) -> (i32, i32) {
    %c0_i32 = arith.constant 0 : i32
    %c0_i32_0 = arith.constant 0 : i32
    return %arg0, %c0_i32 : i32, i32
  }
  func.func @transform_1(%arg0: i32) -> (i32, i32) {
    %c0_i32 = arith.constant 0 : i32
    %c0_i32_0 = arith.constant 0 : i32
    %c0_i32_1 = arith.constant 0 : i32
    return %c0_i32, %c0_i32_0 : i32, i32
  }
  func.func @transform_2(%arg0: i32) -> (i32, i32) {
    %c0_i32 = arith.constant 0 : i32
    %c0_i32_0 = arith.constant 0 : i32
    return %arg0, %c0_i32 : i32, i32
  }
}

</mosaic_0001>

<llo_original>
// kernel: tpu_custom_call.1
$region0: #{tpu_custom_call.1}
  #allocation0 [shape = 'u32[]', space=smem, size = 0x4, offset = 0x4, fixed_abs, tag = 'smem constant byte address 0x4 - core index']
  #allocation1 [shape = 'u32[144,128]{1,0:T(1,128)}', space=vmem, size = 0x12000, scoped, tag = 'internal scratch']
  %s0 = inlined_call_operand.vmem [shape: s32[8,1], index: 0, kind: input, shape index: {}]
  %s1 = inlined_call_operand.hbm [shape: f32[64,128], index: 1, kind: input, shape index: {}]
  %s2 = inlined_call_operand.hbm [shape: f32[8,128], index: 2, kind: output, shape index: {}]
  %s3 = sld [smem:[#allocation0]]
  $region22: #{tpu_custom_call.1} parent=0
    _
  %s5 = ssub.s32 1, %s3
  %s6 = scalar_select 0, %s5, %s3
  $region1: #{tpu_custom_call.1} parent=0
    #allocation2 [shape = 'u8[32768]{0}', space=vmem, size = 0x8000, scoped, tag = 'input window, operand 1, single buffered']
    #allocation3 [shape = 's32[1]{0}', space=sflag, size = 0x4, scoped, tag = 'scoped memory for tpu_custom_call.1']
    #allocation4 [shape = 's32[1]{0}', space=sflag, size = 0x4, scoped, tag = 'scoped memory for tpu_custom_call.1']
    #allocation5 [shape = 'u8[4096]{0}', space=vmem, size = 0x1000, scoped, tag = 'output window, operand 0, single buffered']
    %7 = vsyncpa [#allocation3], 0
    %8 = vsyncpa [#allocation4], 0
    // Predicated region
    $region2: #{tpu_custom_call.1} parent=1 // pred_check
      _
    $region3: #{tpu_custom_call.1} parent=1 // pred_check_branch
      %10 = sbr.rel (0) target = $region5
    $region4: #{tpu_custom_call.1} parent=1 // pred_region
      _
    $region5: #{tpu_custom_call.1} parent=1 // pred_fallthru
      _
    // Predicated region
    $region6: #{tpu_custom_call.1} parent=1 // pred_check
      _
    $region7: #{tpu_custom_call.1} parent=1 // pred_check_branch
      %12 = sbr.rel (0) target = $region9
    $region8: #{tpu_custom_call.1} parent=1 // pred_region
      %s14 = ssub.s32 1024, 1024
      %15 = vsyncadd [#allocation3], %s14
      %s16 = sshll.u32 [#allocation2], 4
      %s17 = int_to_ptr.vmem [resolvable:$true] %s16
      %22 = dma.hbm_to_vmem [thread:$0]  %s1, 1024, %s17, [#allocation3], 128, 128, 8
    $region9: #{tpu_custom_call.1} parent=1 // pred_fallthru
      _
    // Predicated region
    $region10: #{tpu_custom_call.1} parent=1 // pred_check
      _
    $region11: #{tpu_custom_call.1} parent=1 // pred_check_branch
      %24 = sbr.rel (0) target = $region13
    $region12: #{tpu_custom_call.1} parent=1 // pred_region
      %25 = dma.done [#allocation3], 1024
    $region13: #{tpu_custom_call.1} parent=1 // pred_fallthru
      _
    %v26 = vld [vmem:[%s0] sm:$0xff]
    %v27 = vlaneseq
    %v28 = vand.u32 %v27, 127
    %29 = vset.pattern.permute.xlu0 0
    %30 = vperm.xlu0 %29, %v26
    %v31 = vpop.permute.xlu0 %30
    %vm32 = vcmp.eq.s32.totalorder %v28, %v31
    %v33 = vsel %vm32, 1, 0
    %v34 = vcvt.s32.f32 %v33
    %v35 = vld [vmem:[#allocation2] sm:$0xff]
    %v36 = vld [vmem:[#allocation2 + $0x8] sm:$0xff]
    %v37 = vld [vmem:[#allocation2 + $0x10] sm:$0xff]
    %v38 = vld [vmem:[#allocation2 + $0x18] sm:$0xff]
    %v39 = vld [vmem:[#allocation2 + $0x20] sm:$0xff]
    %v40 = vld [vmem:[#allocation2 + $0x28] sm:$0xff]
    %v41 = vld [vmem:[#allocation2 + $0x30] sm:$0xff]
    %v42 = vld [vmem:[#allocation2 + $0x38] sm:$0xff]
    %vm43 = vcmask 523264
    %v45 = vsel %vm43, %v34, 0
    %47 = vmatprep.subr.mxu0 0.0
    %48 = vmatpush1.msra.mxu0 %v35
    %49 = vmatprep.subr.mxu0 0.0
    %50 = vmatpush1.msra.mxu0 %v36
    %51 = vmatprep.subr.mxu0 0.0
    %52 = vmatpush1.msra.mxu0 %v37
    %53 = vmatprep.subr.mxu0 0.0
    %54 = vmatpush1.msra.mxu0 %v38
    %55 = vmatprep.subr.mxu0 0.0
    %56 = vmatpush1.msra.mxu0 %v39
    %57 = vmatprep.subr.mxu0 0.0
    %58 = vmatpush1.msra.mxu0 %v40
    %59 = vmatprep.subr.mxu0 0.0
    %60 = vmatpush1.msra.mxu0 %v41
    %61 = vmatprep.subr.mxu0 0.0
    %62 = vmatpush1.msra.mxu0 %v42
    %63 = vmatprep.subr.mxu0 0.0
    %64 = vmatpush1.msra.mxu0 0.0
    %65 = vmatprep.subr.mxu0 0.0
    %66 = vmatpush1.msra.mxu0 0.0
    %67 = vmatprep.subr.mxu0 0.0
    %68 = vmatpush1.msra.mxu0 0.0
    %69 = vmatprep.subr.mxu0 0.0
    %70 = vmatpush1.msra.mxu0 0.0
    %71 = vmatprep.subr.mxu0 0.0
    %72 = vmatpush1.msra.mxu0 0.0
    %73 = vmatprep.subr.mxu0 0.0
    %74 = vmatpush1.msra.mxu0 0.0
    %75 = vmatprep.subr.mxu0 0.0
    %76 = vmatpush1.msra.mxu0 0.0
    %77 = vmatprep.subr.mxu0 0.0
    %78 = vmatpush1.msra.mxu0 0.0
    %79 = vmatprep.subr.mxu0 0.0
    %80 = vmatpush1.msra.mxu0 0.0
    %81 = vmatprep.subr.mxu0 0.0
    %82 = vmatpush1.msra.mxu0 0.0
    %83 = vmatprep.subr.mxu0 0.0
    %84 = vmatpush1.msra.mxu0 0.0
    %85 = vmatprep.subr.mxu0 0.0
    %86 = vmatpush1.msra.mxu0 0.0
    %87 = vmatprep.subr.mxu0 0.0
    %88 = vmatpush1.msra.mxu0 0.0
    %89 = vmatprep.subr.mxu0 0.0
    %90 = vmatpush1.msra.mxu0 0.0
    %91 = vmatprep.subr.mxu0 0.0
    %92 = vmatpush1.msra.mxu0 0.0
    %93 = vmatprep.subr.mxu0 0.0
    %94 = vmatpush1.msra.mxu0 0.0
    %95 = vmatprep.subr.mxu0 0.0
    %96 = vmatpush1.msra.mxu0 0.0
    %97 = vmatprep.subr.mxu0 0.0
    %98 = vmatpush1.msra.mxu0 0.0
    %99 = vmatprep.subr.mxu0 0.0
    %100 = vmatpush1.msra.mxu0 0.0
    %101 = vmatprep.subr.mxu0 0.0
    %102 = vmatpush1.msra.mxu0 0.0
    %103 = vmatprep.subr.mxu0 0.0
    %104 = vmatpush1.msra.mxu0 0.0
    %105 = vmatprep.subr.mxu0 0.0
    %106 = vmatpush1.msra.mxu0 0.0
    %107 = vmatprep.subr.mxu0 0.0
    %108 = vmatpush1.msra.mxu0 0.0
    %109 = vmatprep.subr.mxu0 0.0
    %110 = vmatpush1.msra.mxu0 0.0
    %111 = vmatprep.mubr.f32.mxu0 0.0
    %112 = vmatmul.mubr.f32.gmra.mrb[0].mxu0 %v45
    %v113 = vpop.f32.mrb[0].mxu0
    %v114 = vadd.f32 0.0, %v113
    %v115 = vpop.f32.mrb[0].mxu0
    %116 = vdwg.mxu0
    %117 = vst [vmem:[#allocation5] sm:$0xff] %v114
    // Predicated region
    $region14: #{tpu_custom_call.1} parent=1 // pred_check
      _
    $region15: #{tpu_custom_call.1} parent=1 // pred_check_branch
      %119 = sbr.rel (0) target = $region17
    $region16: #{tpu_custom_call.1} parent=1 // pred_region
      %s121 = ssub.s32 128, 128
      %122 = vsyncadd [#allocation4], %s121
      %s124 = sshll.u32 [#allocation5], 4
      %s125 = int_to_ptr.vmem [resolvable:$true] %s124
      %127 = dma.vmem_to_hbm [thread:$0]  %s125, 128, %s2, [#allocation4]
    $region17: #{tpu_custom_call.1} parent=1 // pred_fallthru
      _
    // Predicated region
    $region18: #{tpu_custom_call.1} parent=1 // pred_check
      _
    $region19: #{tpu_custom_call.1} parent=1 // pred_check_branch
      %129 = sbr.rel (0) target = $region21
    $region20: #{tpu_custom_call.1} parent=1 // pred_region
      %130 = dma.done [#allocation4], 128
    $region21: #{tpu_custom_call.1} parent=1 // pred_fallthru
      _
    %131 = vsyncpa [#allocation3], 1
    %132 = vsyncpa [#allocation4], 1

</llo_original>
